<compile_context>
chip_gen: v5e
topology: v5e:2x2
jax: 0.10.0
libtpu: 0.0.40
codegen_flags: <defaults>
</compile_context>

<pallas_src>
import math
from functools import partial

import numpy as np
import jax
import jax.numpy as jnp
from jax import lax
from jax.experimental import pallas as pl
from jax.experimental.pallas import tpu as pltpu


def _round_up(x: int, m: int) -> int:
    return ((x + m - 1) // m) * m


def _vmem_capacity_bytes() -> int:
    """Physical VMEM per TensorCore; conservative fallback if unavailable."""
    try:
        cap = int(pltpu.get_tpu_info().vmem_capacity_bytes)
        if cap > 0:
            return cap
    except Exception:
        pass
    return 64 * 1024 * 1024


def _rfft2_basis(nlat: int, nlon: int, lmax=None, mmax=None):
    """Precompute DFT bases ('ortho' norm + truncation folded in).

    Returns
      F   : (2*Lp, Hp) float32 — [Fr ; Fi] latitude DFT (kept rows), zero padded.
      GrT : (nlon, Mp) float32 — cos part of the longitude rDFT, transposed.
      GiT : (nlon, Mp) float32 — sin part.
      lmax, mmax, Lp, Mp, Hp.
    """
    lmax = min(lmax or nlat, nlat)
    mmax = min(mmax or nlon // 2 + 1, nlon // 2 + 1)
    lmax_high = math.ceil(lmax / 2)
    lmax_low = math.floor(lmax / 2)
    scale = 1.0 / math.sqrt(nlat * nlon)          # 'ortho'

    Lp = max(8, _round_up(lmax, 8))               # kept lat rows, sublane padded
    Mp = max(128, _round_up(mmax, 128))           # kept lon freqs, lane padded
    Hp = _round_up(nlat, 8)                       # sublane-aligned contraction dim

    # latitude (dim -2) DFT: kept rows [:lmax_high] ++ [-lmax_low:]
    k = np.arange(nlat)
    ang_lat = -2.0 * np.pi * np.outer(k, k) / nlat
    rows = np.concatenate([np.arange(lmax_high), np.arange(nlat - lmax_low, nlat)])
    F = np.zeros((2 * Lp, Hp), np.float32)
    F[:lmax, :nlat] = np.cos(ang_lat)[rows]
    F[Lp:Lp + lmax, :nlat] = np.sin(ang_lat)[rows]

    # longitude (dim -1) rfft: first mmax frequencies, transposed, zero-padded
    m = np.arange(mmax)
    j = np.arange(nlon)
    ang_lon = -2.0 * np.pi * np.outer(j, m) / nlon
    GrT = np.zeros((nlon, Mp), np.float32)
    GiT = np.zeros((nlon, Mp), np.float32)
    GrT[:, :mmax] = np.cos(ang_lon) * scale
    GiT[:, :mmax] = np.sin(ang_lon) * scale

    return F, GrT, GiT, lmax, mmax, Lp, Mp, Hp


def _vmem_footprint(tb, tm, Hp, W, Lp, Mp, base_esz, ab_esz):
    """Estimated VMEM usage: pipeline buffers + bases + in-kernel intermediates."""
    nm = Mp // tm
    x_tile = 2 * tb * Hp * W * 4                      # x slab, double buffered (f32)
    g_tile = (1 if nm == 1 else 2) * W * 2 * tm * base_esz
    f_tile = 2 * Lp * Hp * base_esz                   # single buffered (constant)
    o_tile = 2 * 2 * tb * Lp * tm * 4                 # f32 output, double buffered
    ab = tb * Hp * 2 * tm * ab_esz                    # scratch
    p_tmp = 3 * (2 * Lp * 2 * tm * 4)                 # p + assembly temporaries
    return x_tile + g_tile + f_tile + o_tile + ab + p_tmp + (2 << 20)


def _choose_tiles(BC, Hp, W, Lp, Mp, base_esz, ab_esz, budget, small_vmem, max_tb=8):
    """Pick (tb images/step, TM lane chunk) under the VMEM budget."""
    tm_cands = [t for t in range(Mp, 127, -128) if Mp % t == 0] or [Mp]
    tb_cands = [d for d in range(min(BC, max_tb), 0, -1) if BC % d == 0]
    if small_vmem and BC >= 2:
        # keep >= 2 steps on the megacore-parallel batch axis (v7x: 2 TCs)
        tb_cands = [d for d in tb_cands if BC // d >= 2] or [1]
    for tb in tb_cands:
        for tm in tm_cands:
            if _vmem_footprint(tb, tm, Hp, W, Lp, Mp, base_esz, ab_esz) <= budget:
                return tb, tm
    return 1, 128


def _rfft2_kernel(x_ref, g_ref, f_ref, y_ref, ab_ref, *, hp, tb, lp, tm,
                  compute_dtype):
    # x_ref : (tb*hp, nlon)    tb images stacked on rows
    # g_ref : (nlon, 2*tm)     [Gr_chunk | Gi_chunk] longitude rDFT columns
    # f_ref : (2*lp, hp)       [Fr ; Fi] latitude DFT rows
    # y_ref : (2, tb, lp, tm)  [0]=real, [1]=imag
    # ab_ref: (tb*hp, 2*tm)    scratch holding [A | B] for all tb images

    # Fused longitude rDFT over all tb images at once (one tall MXU matmul).
    ab = jnp.dot(x_ref[...].astype(compute_dtype), g_ref[...],
                 preferred_element_type=jnp.float32)
    ab_ref[...] = ab.astype(ab_ref.dtype)

    f = f_ref[...]

    def lat_dft(b, carry):
        row0 = pl.multiple_of(b * hp, 8)              # sublane-aligned view
        ab_b = ab_ref[pl.ds(row0, hp), :]             # (hp, 2*tm)
        p = jnp.dot(f, ab_b, preferred_element_type=jnp.float32)  # (2*lp, 2*tm)
        y_ref[0, b, :, :] = p[:lp, :tm] - p[lp:, tm:]
        y_ref[1, b, :, :] = p[:lp, tm:] + p[lp:, :tm]
        return carry

    lax.fori_loop(0, tb, lat_dft, 0, unroll=True)


def real_fft2(x, nlat: int, nlon: int, lmax=None, mmax=None, *,
              tb=None, tm=None, use_bf16: bool = False):
    """Pallas TPU implementation of RealFFT2.forward(x, norm='ortho')."""
    B, C, H, W = x.shape
    assert (H, W) == (nlat, nlon), "input spatial dims must equal (nlat, nlon)"

    base_dtype = jnp.bfloat16 if use_bf16 else jnp.float32
    base_esz = 2 if use_bf16 else 4
    ab_dtype = base_dtype

    F_np, GrT, GiT, L, M, Lp, Mp, Hp = _rfft2_basis(nlat, nlon, lmax, mmax)

    BC = B * C
    xf = x.reshape(BC, H, W).astype(jnp.float32)
    if Hp != H:
        # sublane-align the contraction dim (only for ragged nlat, e.g. 721)
        xf = jnp.pad(xf, ((0, 0), (0, Hp - H), (0, 0)))
    x2 = xf.reshape(BC * Hp, W)                       # free reshape: tall matmul LHS

    # ---- generation-aware tiling & VMEM budget (includes G/F and scratch) ----
    cap = _vmem_capacity_bytes()
    small_vmem = cap <= 80 * 1024 * 1024              # v7x-like (64 MiB / TC)
    budget = min(int(0.45 * cap), 56 * 1024 * 1024)
    tb_auto, tm_auto = _choose_tiles(BC, Hp, W, Lp, Mp, base_esz, base_esz,
                                     budget, small_vmem)
    tb = tb_auto if tb is None else int(tb)
    tm = tm_auto if tm is None else int(tm)
    assert BC % tb == 0, "tb must divide batch*channels"
    assert Mp % tm == 0 and tm % 128 == 0, "tm must be a multiple of 128 dividing Mp"
    NM = Mp // tm

    footprint = _vmem_footprint(tb, tm, Hp, W, Lp, Mp, base_esz, base_esz)
    vmem_limit = max(16 * 1024 * 1024,
                     min(int(0.92 * cap), footprint + (6 << 20)))

    # ---- bases: F = [Fr ; Fi]; G chunk-interleaved as [... Gr_j | Gi_j ...] ----
    G_np = np.concatenate([GrT.reshape(W, NM, tm), GiT.reshape(W, NM, tm)],
                          axis=2).reshape(W, 2 * Mp)
    G = jnp.asarray(G_np, dtype=base_dtype)
    F = jnp.asarray(F_np, dtype=base_dtype)

    g_spec_kwargs = dict(pipeline_mode=pl.Buffered(1)) if NM == 1 else {}
    grid = (BC // tb, NM)

    out = pl.pallas_call(
        partial(_rfft2_kernel, hp=Hp, tb=tb, lp=Lp, tm=tm,
                compute_dtype=base_dtype),
        out_shape=jax.ShapeDtypeStruct((2, BC, Lp, Mp), jnp.float32),
        grid=grid,
        in_specs=[
            # x slab: invariant over the inner Mp-chunk axis -> fetched once per i
            pl.BlockSpec((tb * Hp, W), lambda i, j: (i, 0)),
            # longitude basis chunk [Gr_j | Gi_j]
            pl.BlockSpec((W, 2 * tm), lambda i, j: (0, j), **g_spec_kwargs),
            # latitude basis: constant block -> single buffered
            pl.BlockSpec((2 * Lp, Hp), lambda i, j: (0, 0),
                         pipeline_mode=pl.Buffered(1)),
        ],
        out_specs=pl.BlockSpec((2, tb, Lp, tm), lambda i, j: (0, i, 0, j)),
        scratch_shapes=[pltpu.VMEM((tb * Hp, 2 * tm), ab_dtype)],
        compiler_params=pltpu.CompilerParams(
            dimension_semantics=("parallel", "arbitrary"),
            vmem_limit_bytes=vmem_limit),
    )(x2, G, F)

    yr = out[0, :, :L, :M]
    yi = out[1, :, :L, :M]
    return lax.complex(yr, yi).reshape(B, C, L, M)


def _reference_numpy(x_np, nlat, nlon, lmax, mmax):
    """Pure-NumPy reference matching RealFFT2.forward(x, norm='ortho')."""
    lmax = min(lmax or nlat, nlat)
    mmax = min(mmax or nlon // 2 + 1, nlon // 2 + 1)
    lmax_high = math.ceil(lmax / 2)
    lmax_low = math.floor(lmax / 2)
    y = np.fft.rfft2(x_np, s=(nlat, nlon), axes=(-2, -1), norm="ortho")
    return np.concatenate(
        (y[..., :lmax_high, :mmax], y[..., nlat - lmax_low:, :mmax]), axis=-2)


if __name__ == "__main__":
    key = jax.random.PRNGKey(0)
    k1, k2 = jax.random.split(key)

    # Case 1: truncated spectrum (exercises lane/sublane padding + truncation).
    B, C, nlat, nlon = 2, 4, 16, 16
    lmax, mmax = 10, 6
    x = jax.random.normal(k1, (B, C, nlat, nlon), dtype=jnp.float32)
    y = jax.block_until_ready(real_fft2(x, nlat, nlon, lmax=lmax, mmax=mmax))
    y_ref = _reference_numpy(np.asarray(x), nlat, nlon, lmax, mmax)
    assert y.shape == y_ref.shape, (y.shape, y_ref.shape)
    assert y.dtype == jnp.complex64
    np.testing.assert_allclose(np.asarray(y), y_ref, rtol=5e-3, atol=5e-3)

    # Case 2: untruncated spectrum with >1 Mp chunk — exercises the inner grid
    # axis and the interleaved [Gr|Gi] basis layout (tm forced to 128).
    B2, C2, nlat2, nlon2 = 1, 2, 16, 384
    x2 = jax.random.normal(k2, (B2, C2, nlat2, nlon2), dtype=jnp.float32)
    y2 = jax.block_until_ready(real_fft2(x2, nlat2, nlon2, tm=128))
    y2_ref = _reference_numpy(np.asarray(x2), nlat2, nlon2, None, None)
    assert y2.shape == y2_ref.shape, (y2.shape, y2_ref.shape)
    np.testing.assert_allclose(np.asarray(y2), y2_ref, rtol=5e-3, atol=5e-3)

    print("KERNEL_OK")
</pallas_src>

<mosaic_0001>
module attributes {stable_mosaic.version = 11 : i64} {
  func.func @_rfft2_kernel(%arg0: i32, %arg1: i32, %arg2: memref<64x16xf32, #tpu.memory_space<vmem>>, %arg3: memref<16x256xf32, #tpu.memory_space<vmem>>, %arg4: memref<32x16xf32, #tpu.memory_space<vmem>>, %arg5: memref<2x4x16x128xf32, #tpu.memory_space<vmem>>, %arg6: memref<64x256xf32, #tpu.memory_space<vmem>>) attributes {dimension_semantics = [#tpu.dimension_semantics<parallel>, #tpu.dimension_semantics<arbitrary>], iteration_bounds = array<i64: 2, 1>, scalar_prefetch = 0 : i64, scratch_operands = 1 : i64, tpu.core_type = #tpu.core_type<tc>, window_params = [{transform_indices = @transform_0, window_bounds = array<i64: 64, 16>}, {pipeline_mode = #tpu.pipeline_mode<synchronous>, transform_indices = @transform_1, window_bounds = array<i64: 16, 256>}, {pipeline_mode = #tpu.pipeline_mode<synchronous>, transform_indices = @transform_2, window_bounds = array<i64: 32, 16>}, {transform_indices = @transform_3, window_bounds = array<i64: 2, 4, 16, 128>}]} {
    %c0 = arith.constant 0 : index
    %c0_0 = arith.constant 0 : index
    %0 = vector.load %arg2[%c0, %c0_0] : memref<64x16xf32, #tpu.memory_space<vmem>>, vector<64x16xf32>
    %c0_1 = arith.constant 0 : index
    %c0_2 = arith.constant 0 : index
    %1 = vector.load %arg3[%c0_1, %c0_2] : memref<16x256xf32, #tpu.memory_space<vmem>>, vector<16x256xf32>
    %cst = arith.constant dense<0.000000e+00> : vector<64x256xf32>
    %2 = tpu.matmul %0, %1, %cst {dimension_numbers = #tpu.dot_dimension_numbers<[1], [0], [0], [1], [0, 0, 1, 1], [], []>} : vector<64x16xf32>, vector<16x256xf32>, vector<64x256xf32> -> vector<64x256xf32>
    %c0_3 = arith.constant 0 : index
    %c0_4 = arith.constant 0 : index
    %3 = vector.load %arg6[%c0_3, %c0_4] : memref<64x256xf32, #tpu.memory_space<vmem>>, vector<64x256xf32>
    tpu.vector_store %arg6[%c0_3, %c0_4], %2 {strides = array<i32>} : memref<64x256xf32, #tpu.memory_space<vmem>>, vector<64x256xf32>,
    %c0_5 = arith.constant 0 : index
    %c0_6 = arith.constant 0 : index
    %4 = vector.load %arg4[%c0_5, %c0_6] : memref<32x16xf32, #tpu.memory_space<vmem>>, vector<32x16xf32>
    %c0_i32 = arith.constant 0 : i32
    %c16_i32 = arith.constant 16 : i32
    %5 = arith.muli %c0_i32, %c16_i32 : i32
    %6 = tpu.assume_multiple %5, 8 : i32
    %7 = arith.index_cast %6 : i32 to index
    %c0_7 = arith.constant 0 : index
    %8 = vector.load %arg6[%7, %c0_7] : memref<64x256xf32, #tpu.memory_space<vmem>>, vector<16x256xf32>
    %cst_8 = arith.constant dense<0.000000e+00> : vector<32x256xf32>
    %9 = tpu.matmul %4, %8, %cst_8 {dimension_numbers = #tpu.dot_dimension_numbers<[1], [0], [0], [1], [0, 0, 1, 1], [], []>} : vector<32x16xf32>, vector<16x256xf32>, vector<32x256xf32> -> vector<32x256xf32>
    %10 = vector.extract_strided_slice %9 {offsets = [0, 0], sizes = [16, 128], strides = [1, 1]} : vector<32x256xf32> to vector<16x128xf32>
    %11 = vector.extract_strided_slice %9 {offsets = [16, 128], sizes = [16, 128], strides = [1, 1]} : vector<32x256xf32> to vector<16x128xf32>
    %12 = arith.subf %10, %11 : vector<16x128xf32>
    %c0_9 = arith.constant 0 : index
    %13 = arith.index_cast %c0_i32 : i32 to index
    %c0_10 = arith.constant 0 : index
    %c0_11 = arith.constant 0 : index
    %14 = vector.load %arg5[%c0_9, %13, %c0_10, %c0_11] : memref<2x4x16x128xf32, #tpu.memory_space<vmem>>, vector<1x1x16x128xf32>
    %15 = vector.shape_cast %14 : vector<1x1x16x128xf32> to vector<16x128xf32>
    %16 = vector.shape_cast %12 : vector<16x128xf32> to vector<1x1x16x128xf32>
    tpu.vector_store %arg5[%c0_9, %13, %c0_10, %c0_11], %16 {strides = array<i32>} : memref<2x4x16x128xf32, #tpu.memory_space<vmem>>, vector<1x1x16x128xf32>,
    %17 = vector.extract_strided_slice %9 {offsets = [0, 128], sizes = [16, 128], strides = [1, 1]} : vector<32x256xf32> to vector<16x128xf32>
    %18 = vector.extract_strided_slice %9 {offsets = [16, 0], sizes = [16, 128], strides = [1, 1]} : vector<32x256xf32> to vector<16x128xf32>
    %19 = arith.addf %17, %18 : vector<16x128xf32>
    %c1 = arith.constant 1 : index
    %20 = arith.index_cast %c0_i32 : i32 to index
    %c0_12 = arith.constant 0 : index
    %c0_13 = arith.constant 0 : index
    %21 = vector.load %arg5[%c1, %20, %c0_12, %c0_13] : memref<2x4x16x128xf32, #tpu.memory_space<vmem>>, vector<1x1x16x128xf32>
    %22 = vector.shape_cast %21 : vector<1x1x16x128xf32> to vector<16x128xf32>
    %23 = vector.shape_cast %19 : vector<16x128xf32> to vector<1x1x16x128xf32>
    tpu.vector_store %arg5[%c1, %20, %c0_12, %c0_13], %23 {strides = array<i32>} : memref<2x4x16x128xf32, #tpu.memory_space<vmem>>, vector<1x1x16x128xf32>,
    %c1_i32 = arith.constant 1 : i32
    %c16_i32_14 = arith.constant 16 : i32
    %24 = arith.muli %c1_i32, %c16_i32_14 : i32
    %25 = tpu.assume_multiple %24, 8 : i32
    %26 = arith.index_cast %25 : i32 to index
    %c0_15 = arith.constant 0 : index
    %27 = vector.load %arg6[%26, %c0_15] : memref<64x256xf32, #tpu.memory_space<vmem>>, vector<16x256xf32>
    %cst_16 = arith.constant dense<0.000000e+00> : vector<32x256xf32>
    %28 = tpu.matmul %4, %27, %cst_16 {dimension_numbers = #tpu.dot_dimension_numbers<[1], [0], [0], [1], [0, 0, 1, 1], [], []>} : vector<32x16xf32>, vector<16x256xf32>, vector<32x256xf32> -> vector<32x256xf32>
    %29 = vector.extract_strided_slice %28 {offsets = [0, 0], sizes = [16, 128], strides = [1, 1]} : vector<32x256xf32> to vector<16x128xf32>
    %30 = vector.extract_strided_slice %28 {offsets = [16, 128], sizes = [16, 128], strides = [1, 1]} : vector<32x256xf32> to vector<16x128xf32>
    %31 = arith.subf %29, %30 : vector<16x128xf32>
    %c0_17 = arith.constant 0 : index
    %32 = arith.index_cast %c1_i32 : i32 to index
    %c0_18 = arith.constant 0 : index
    %c0_19 = arith.constant 0 : index
    %33 = vector.load %arg5[%c0_17, %32, %c0_18, %c0_19] : memref<2x4x16x128xf32, #tpu.memory_space<vmem>>, vector<1x1x16x128xf32>
    %34 = vector.shape_cast %33 : vector<1x1x16x128xf32> to vector<16x128xf32>
    %35 = vector.shape_cast %31 : vector<16x128xf32> to vector<1x1x16x128xf32>
    tpu.vector_store %arg5[%c0_17, %32, %c0_18, %c0_19], %35 {strides = array<i32>} : memref<2x4x16x128xf32, #tpu.memory_space<vmem>>, vector<1x1x16x128xf32>,
    %36 = vector.extract_strided_slice %28 {offsets = [0, 128], sizes = [16, 128], strides = [1, 1]} : vector<32x256xf32> to vector<16x128xf32>
    %37 = vector.extract_strided_slice %28 {offsets = [16, 0], sizes = [16, 128], strides = [1, 1]} : vector<32x256xf32> to vector<16x128xf32>
    %38 = arith.addf %36, %37 : vector<16x128xf32>
    %c1_20 = arith.constant 1 : index
    %39 = arith.index_cast %c1_i32 : i32 to index
    %c0_21 = arith.constant 0 : index
    %c0_22 = arith.constant 0 : index
    %40 = vector.load %arg5[%c1_20, %39, %c0_21, %c0_22] : memref<2x4x16x128xf32, #tpu.memory_space<vmem>>, vector<1x1x16x128xf32>
    %41 = vector.shape_cast %40 : vector<1x1x16x128xf32> to vector<16x128xf32>
    %42 = vector.shape_cast %38 : vector<16x128xf32> to vector<1x1x16x128xf32>
    tpu.vector_store %arg5[%c1_20, %39, %c0_21, %c0_22], %42 {strides = array<i32>} : memref<2x4x16x128xf32, #tpu.memory_space<vmem>>, vector<1x1x16x128xf32>,
    %c2_i32 = arith.constant 2 : i32
    %c16_i32_23 = arith.constant 16 : i32
    %43 = arith.muli %c2_i32, %c16_i32_23 : i32
    %44 = tpu.assume_multiple %43, 8 : i32
    %45 = arith.index_cast %44 : i32 to index
    %c0_24 = arith.constant 0 : index
    %46 = vector.load %arg6[%45, %c0_24] : memref<64x256xf32, #tpu.memory_space<vmem>>, vector<16x256xf32>
    %cst_25 = arith.constant dense<0.000000e+00> : vector<32x256xf32>
    %47 = tpu.matmul %4, %46, %cst_25 {dimension_numbers = #tpu.dot_dimension_numbers<[1], [0], [0], [1], [0, 0, 1, 1], [], []>} : vector<32x16xf32>, vector<16x256xf32>, vector<32x256xf32> -> vector<32x256xf32>
    %48 = vector.extract_strided_slice %47 {offsets = [0, 0], sizes = [16, 128], strides = [1, 1]} : vector<32x256xf32> to vector<16x128xf32>
    %49 = vector.extract_strided_slice %47 {offsets = [16, 128], sizes = [16, 128], strides = [1, 1]} : vector<32x256xf32> to vector<16x128xf32>
    %50 = arith.subf %48, %49 : vector<16x128xf32>
    %c0_26 = arith.constant 0 : index
    %51 = arith.index_cast %c2_i32 : i32 to index
    %c0_27 = arith.constant 0 : index
    %c0_28 = arith.constant 0 : index
    %52 = vector.load %arg5[%c0_26, %51, %c0_27, %c0_28] : memref<2x4x16x128xf32, #tpu.memory_space<vmem>>, vector<1x1x16x128xf32>
    %53 = vector.shape_cast %52 : vector<1x1x16x128xf32> to vector<16x128xf32>
    %54 = vector.shape_cast %50 : vector<16x128xf32> to vector<1x1x16x128xf32>
    tpu.vector_store %arg5[%c0_26, %51, %c0_27, %c0_28], %54 {strides = array<i32>} : memref<2x4x16x128xf32, #tpu.memory_space<vmem>>, vector<1x1x16x128xf32>,
    %55 = vector.extract_strided_slice %47 {offsets = [0, 128], sizes = [16, 128], strides = [1, 1]} : vector<32x256xf32> to vector<16x128xf32>
    %56 = vector.extract_strided_slice %47 {offsets = [16, 0], sizes = [16, 128], strides = [1, 1]} : vector<32x256xf32> to vector<16x128xf32>
    %57 = arith.addf %55, %56 : vector<16x128xf32>
    %c1_29 = arith.constant 1 : index
    %58 = arith.index_cast %c2_i32 : i32 to index
    %c0_30 = arith.constant 0 : index
    %c0_31 = arith.constant 0 : index
    %59 = vector.load %arg5[%c1_29, %58, %c0_30, %c0_31] : memref<2x4x16x128xf32, #tpu.memory_space<vmem>>, vector<1x1x16x128xf32>
    %60 = vector.shape_cast %59 : vector<1x1x16x128xf32> to vector<16x128xf32>
    %61 = vector.shape_cast %57 : vector<16x128xf32> to vector<1x1x16x128xf32>
    tpu.vector_store %arg5[%c1_29, %58, %c0_30, %c0_31], %61 {strides = array<i32>} : memref<2x4x16x128xf32, #tpu.memory_space<vmem>>, vector<1x1x16x128xf32>,
    %c3_i32 = arith.constant 3 : i32
    %c16_i32_32 = arith.constant 16 : i32
    %62 = arith.muli %c3_i32, %c16_i32_32 : i32
    %63 = tpu.assume_multiple %62, 8 : i32
    %64 = arith.index_cast %63 : i32 to index
    %c0_33 = arith.constant 0 : index
    %65 = vector.load %arg6[%64, %c0_33] : memref<64x256xf32, #tpu.memory_space<vmem>>, vector<16x256xf32>
    %cst_34 = arith.constant dense<0.000000e+00> : vector<32x256xf32>
    %66 = tpu.matmul %4, %65, %cst_34 {dimension_numbers = #tpu.dot_dimension_numbers<[1], [0], [0], [1], [0, 0, 1, 1], [], []>} : vector<32x16xf32>, vector<16x256xf32>, vector<32x256xf32> -> vector<32x256xf32>
    %67 = vector.extract_strided_slice %66 {offsets = [0, 0], sizes = [16, 128], strides = [1, 1]} : vector<32x256xf32> to vector<16x128xf32>
    %68 = vector.extract_strided_slice %66 {offsets = [16, 128], sizes = [16, 128], strides = [1, 1]} : vector<32x256xf32> to vector<16x128xf32>
    %69 = arith.subf %67, %68 : vector<16x128xf32>
    %c0_35 = arith.constant 0 : index
    %70 = arith.index_cast %c3_i32 : i32 to index
    %c0_36 = arith.constant 0 : index
    %c0_37 = arith.constant 0 : index
    %71 = vector.load %arg5[%c0_35, %70, %c0_36, %c0_37] : memref<2x4x16x128xf32, #tpu.memory_space<vmem>>, vector<1x1x16x128xf32>
    %72 = vector.shape_cast %71 : vector<1x1x16x128xf32> to vector<16x128xf32>
    %73 = vector.shape_cast %69 : vector<16x128xf32> to vector<1x1x16x128xf32>
    tpu.vector_store %arg5[%c0_35, %70, %c0_36, %c0_37], %73 {strides = array<i32>} : memref<2x4x16x128xf32, #tpu.memory_space<vmem>>, vector<1x1x16x128xf32>,
    %74 = vector.extract_strided_slice %66 {offsets = [0, 128], sizes = [16, 128], strides = [1, 1]} : vector<32x256xf32> to vector<16x128xf32>
    %75 = vector.extract_strided_slice %66 {offsets = [16, 0], sizes = [16, 128], strides = [1, 1]} : vector<32x256xf32> to vector<16x128xf32>
    %76 = arith.addf %74, %75 : vector<16x128xf32>
    %c1_38 = arith.constant 1 : index
    %77 = arith.index_cast %c3_i32 : i32 to index
    %c0_39 = arith.constant 0 : index
    %c0_40 = arith.constant 0 : index
    %78 = vector.load %arg5[%c1_38, %77, %c0_39, %c0_40] : memref<2x4x16x128xf32, #tpu.memory_space<vmem>>, vector<1x1x16x128xf32>
    %79 = vector.shape_cast %78 : vector<1x1x16x128xf32> to vector<16x128xf32>
    %80 = vector.shape_cast %76 : vector<16x128xf32> to vector<1x1x16x128xf32>
    tpu.vector_store %arg5[%c1_38, %77, %c0_39, %c0_40], %80 {strides = array<i32>} : memref<2x4x16x128xf32, #tpu.memory_space<vmem>>, vector<1x1x16x128xf32>,
    %c4_i32 = arith.constant 4 : i32
    return
  }
  func.func @transform_0(%arg0: i32, %arg1: i32) -> (i32, i32) {
    %c0_i32 = arith.constant 0 : i32
    %c0_i32_0 = arith.constant 0 : i32
    return %arg0, %c0_i32 : i32, i32
  }
  func.func @transform_1(%arg0: i32, %arg1: i32) -> (i32, i32) {
    %c0_i32 = arith.constant 0 : i32
    %c0_i32_0 = arith.constant 0 : i32
    return %c0_i32, %arg1 : i32, i32
  }
  func.func @transform_2(%arg0: i32, %arg1: i32) -> (i32, i32) {
    %c0_i32 = arith.constant 0 : i32
    %c0_i32_0 = arith.constant 0 : i32
    %c0_i32_1 = arith.constant 0 : i32
    return %c0_i32, %c0_i32_0 : i32, i32
  }
  func.func @transform_3(%arg0: i32, %arg1: i32) -> (i32, i32, i32, i32) {
    %c0_i32 = arith.constant 0 : i32
    %c0_i32_0 = arith.constant 0 : i32
    %c0_i32_1 = arith.constant 0 : i32
    return %c0_i32, %arg0, %c0_i32_0, %arg1 : i32, i32, i32, i32
  }
}

</mosaic_0001>

<llo_original>
// kernel: tpu_custom_call.1
$region0: #{tpu_custom_call.1}
  #allocation0 [shape = 'u32[]', space=smem, size = 0x4, offset = 0x4, fixed_abs, tag = 'smem constant byte address 0x4 - core index']
  #allocation1 [shape = 'u32[72,128]{1,0:T(1,128)}', space=vmem, size = 0x9000, scoped, tag = 'internal scratch']
  #allocation2 [shape = 'f32[64,256]{1,0:T(8,128)}', space=vmem, size = 0x10000, scoped, tag = 'scratch operand']
  #allocation5 [shape = 's32[]', space=sflag, size = 0x4, offset = 0, fixed_abs, tag = 'sflag constant byte address 0x0 - dummy sync flag']
  %s0 = inlined_call_operand.vmem [shape: f32[128,16], index: 0, kind: input, shape index: {}]
  %s1 = inlined_call_operand.vmem [shape: f32[16,256], index: 1, kind: input, shape index: {}]
  %s2 = inlined_call_operand.vmem [shape: f32[32,16], index: 2, kind: input, shape index: {}]
  %s3 = inlined_call_operand.hbm [shape: f32[2,8,16,128], index: 3, kind: output, shape index: {}]
  %s4 = sld [smem:[#allocation0]]
  $region45: #{tpu_custom_call.1} parent=0
    _
  %s6 = ssub.s32 1, %s4
  %s7 = scalar_select 0, %s6, %s4
  $region1: #{tpu_custom_call.1} parent=0
    #allocation3 [shape = 'u8[131072]{0}', space=vmem, size = 0x20000, scoped, tag = 'output window, operand 0']
    #allocation4 [shape = 's32[2]{0}', space=sflag, size = 0x8, scoped, tag = 'scoped memory for tpu_custom_call.1']
    %8 = vsyncpa [#allocation4], 0
    %s9 = scalar_lea.sflag [#allocation4], 1
    %10 = vsyncpa %s9, 0
    loop: start=0, step=1, limit=4
    $region2: #{tpu_custom_call.1} parent=1 // loop_pre_header
      _
    $region3: #{tpu_custom_call.1} parent=1 // loop_header
      %s12 = sphi 0, %s16
      %p13 = scmp.ge.s32.totalorder %s12, 4
      %s19 = sphi 0, %s31
      %s20 = sphi 0, %s27
      %s21 = sphi 0, %s19
      %s22 = sphi 0, %s20
      %s23 = sphi 0, %s21
      %s24 = sphi 0, %s22
      %s34 = sphi 0, %s36
      %s37 = sphi 0, %s34
      %s38 = sphi 0, %s37
      %s54 = sphi 0, %s38
      %s60 = sphi 0, %s62
      %s63 = sphi 0, %s60
      %s64 = sphi 0, %s63
      %s80 = sphi 0, %s64
      %s84 = sphi 0, %s84
      %s86 = sphi 0, %s84
      %s87 = sphi 0, %s86
      %s101 = sphi 0, %s87
      %s109 = sphi 0, %s111
      %s112 = sphi 0, %s109
      %s113 = sphi 0, %s112
      %s129 = sphi 0, %s113
    $region4: #{tpu_custom_call.1} parent=1 // loop_header_branch
      %15 = sbr.rel (%p13) target = $region8
    $region5: #{tpu_custom_call.1} parent=1 // loop_body
      %s17 = ssub.s32 %s12, 1
      %s18 = ssub.s32 %s12, 2
      %s25 = sadd.s32 1, %s20
      %p26 = scmp.ge.s32.totalorder %s25, 1
      %s27 = scalar_select %p26, 0, %s25
      %s28 = sadd.s32 1, %s19
      %s29 = scalar_select %p26, %s28, %s19
      %p30 = scmp.ge.s32.totalorder %s29, 2
      %s31 = scalar_select %p30, 0, %s29
      %s32 = ssub.s32 %s19, %s31
      %p33 = scmp.eq.s32.totalorder %s32, 0
      %s35 = sadd.s32 %s34, 1
      %s36 = scalar_select %p33, %s34, %s35
      %p39 = pneg %p33
      %p40 = scmp.eq.s32.totalorder %s12, 1
      %p41 = por %p39, %p40
      %p42 = scmp.ne.s32.totalorder %s34, %s37
      %p43 = scmp.eq.s32.totalorder %s12, 0
      %p44 = por %p42, %p43
      %p45 = scmp.ne.s32.totalorder %s34, %s37
      %p46 = scmp.eq.s32.totalorder %s17, 1
      %p47 = por %p45, %p46
      %p48 = scmp.ne.s32.totalorder %s37, %s38
      %p49 = scmp.eq.s32.totalorder %s17, 0
      %p50 = por %p48, %p49
      %p51 = scmp.ne.s32.totalorder %s37, %s38
      %p52 = scmp.eq.s32.totalorder %s18, 1
      %p53 = por %p51, %p52
      %p55 = scmp.ne.s32.totalorder %s38, %s54
      %p56 = scmp.eq.s32.totalorder %s18, 0
      %p57 = por %p55, %p56
      %s58 = ssub.s32 %s20, %s27
      %p59 = scmp.eq.s32.totalorder %s58, 0
      %s61 = sadd.s32 %s60, 1
      %s62 = scalar_select %p59, %s60, %s61
      %p65 = pneg %p59
      %p66 = scmp.eq.s32.totalorder %s12, 1
      %p67 = por %p65, %p66
      %p68 = scmp.ne.s32.totalorder %s60, %s63
      %p69 = scmp.eq.s32.totalorder %s12, 0
      %p70 = por %p68, %p69
      %p71 = scmp.ne.s32.totalorder %s60, %s63
      %p72 = scmp.eq.s32.totalorder %s17, 1
      %p73 = por %p71, %p72
      %p74 = scmp.ne.s32.totalorder %s63, %s64
      %p75 = scmp.eq.s32.totalorder %s17, 0
      %p76 = por %p74, %p75
      %p77 = scmp.ne.s32.totalorder %s63, %s64
      %p78 = scmp.eq.s32.totalorder %s18, 1
      %p79 = por %p77, %p78
      %p81 = scmp.ne.s32.totalorder %s64, %s80
      %p82 = scmp.eq.s32.totalorder %s18, 0
      %p83 = por %p81, %p82
      %s85 = sadd.s32 %s84, 1
      %p88 = scmp.eq.s32.totalorder %s12, 1
      %p89 = scmp.ne.s32.totalorder %s84, %s86
      %p90 = scmp.eq.s32.totalorder %s12, 0
      %p91 = por %p89, %p90
      %p92 = scmp.ne.s32.totalorder %s84, %s86
      %p93 = scmp.eq.s32.totalorder %s17, 1
      %p94 = por %p92, %p93
      %p95 = scmp.ne.s32.totalorder %s86, %s87
      %p96 = scmp.eq.s32.totalorder %s17, 0
      %p97 = por %p95, %p96
      %p98 = scmp.ne.s32.totalorder %s86, %s87
      %p99 = scmp.eq.s32.totalorder %s18, 1
      %p100 = por %p98, %p99
      %p102 = scmp.ne.s32.totalorder %s87, %s101
      %p103 = scmp.eq.s32.totalorder %s18, 0
      %p104 = por %p102, %p103
      %s105 = ssub.s32 %s19, %s31
      %s106 = ssub.s32 %s20, %s27
      %s107 = sor.u32 %s105, %s106
      %p108 = scmp.eq.s32.totalorder %s107, 0
      %s110 = sadd.s32 %s109, 1
      %s111 = scalar_select %p108, %s109, %s110
      %p114 = pneg %p108
      %p115 = scmp.eq.s32.totalorder %s12, 1
      %p116 = por %p114, %p115
      %p117 = scmp.ne.s32.totalorder %s109, %s112
      %p118 = scmp.eq.s32.totalorder %s12, 0
      %p119 = por %p117, %p118
      %p120 = scmp.ne.s32.totalorder %s109, %s112
      %p121 = scmp.eq.s32.totalorder %s17, 1
      %p122 = por %p120, %p121
      %p123 = scmp.ne.s32.totalorder %s112, %s113
      %p124 = scmp.eq.s32.totalorder %s17, 0
      %p125 = por %p123, %p124
      %p126 = scmp.ne.s32.totalorder %s112, %s113
      %p127 = scmp.eq.s32.totalorder %s18, 1
      %p128 = por %p126, %p127
      %p130 = scmp.ne.s32.totalorder %s113, %s129
      %p131 = scmp.eq.s32.totalorder %s18, 0
      %p132 = por %p130, %p131
      %p133 = scmp.le.s32.totalorder 1, %s12
      %p134 = scmp.lt.s32.totalorder %s12, 3
      %p135 = pnand %p133, %p134
      %p136 = pneg %p135
      // Predicated region
      $region9: #{tpu_custom_call.1} parent=5 // pred_check
        _
      $region10: #{tpu_custom_call.1} parent=5 // pred_check_branch
        %138 = sbr.rel (%p135) target = $region12
      $region11: #{tpu_custom_call.1} parent=5 // pred_region
        %s139 = ssub.s32 %s12, 1
        // Predicated region
        $region13: #{tpu_custom_call.1} parent=11 // pred_check
          %p140 = pneg %p76
        $region14: #{tpu_custom_call.1} parent=11 // pred_check_branch
          %142 = sbr.rel (%p140) target = $region16
        $region15: #{tpu_custom_call.1} parent=11 // pred_region
          %s143 = smul.u32 2, %s22
          %p144 = scmp.lt.s32.totalorder %s143, 1
          %s145 = scalar_select %p144, %s143, 1
          %s146 = smul.addr %s145, 8
          %s147 = scalar_lea.vmem %s1, %s146
          %s148 = smul.u32 2, %s22
        $region16: #{tpu_custom_call.1} parent=11 // pred_fallthru
          _
        // Predicated region
        $region17: #{tpu_custom_call.1} parent=11 // pred_check
          %p149 = pneg %p97
        $region18: #{tpu_custom_call.1} parent=11 // pred_check_branch
          %151 = sbr.rel (%p149) target = $region20
        $region19: #{tpu_custom_call.1} parent=11 // pred_region
          _
        $region20: #{tpu_custom_call.1} parent=11 // pred_fallthru
          _
      $region12: #{tpu_custom_call.1} parent=5 // pred_fallthru
        _
      %p152 = scmp.lt.s32.totalorder %s12, 2
      // Predicated region
      $region21: #{tpu_custom_call.1} parent=5 // pred_check
        %p153 = pneg %p152
      $region22: #{tpu_custom_call.1} parent=5 // pred_check_branch
        %155 = sbr.rel (%p153) target = $region24
      $region23: #{tpu_custom_call.1} parent=5 // pred_region
        // Predicated region
        $region25: #{tpu_custom_call.1} parent=23 // pred_check
          %p156 = pneg %p44
        $region26: #{tpu_custom_call.1} parent=23 // pred_check_branch
          %158 = sbr.rel (%p156) target = $region28
        $region27: #{tpu_custom_call.1} parent=23 // pred_region
          %s159 = smul.u32 8, %s19
          %p160 = scmp.lt.s32.totalorder %s159, 15
          %s161 = scalar_select %p160, %s159, 15
          %s162 = smul.addr %s161, 8
          %s163 = scalar_lea.vmem %s0, %s162
          %s164 = smul.u32 8, %s19
        $region28: #{tpu_custom_call.1} parent=23 // pred_fallthru
          _
      $region24: #{tpu_custom_call.1} parent=5 // pred_fallthru
        _
      %p165 = scmp.le.s32.totalorder 1, %s12
      %p166 = scmp.lt.s32.totalorder %s12, 3
      %p167 = pnand %p165, %p166
      %p168 = pneg %p167
      // Predicated region
      $region29: #{tpu_custom_call.1} parent=5 // pred_check
        _
      $region30: #{tpu_custom_call.1} parent=5 // pred_check_branch
        %170 = sbr.rel (%p167) target = $region32
      $region31: #{tpu_custom_call.1} parent=5 // pred_region
        %s171 = ssub.s32 %s12, 1
        %s172 = smul.u32 8, %s21
        %p173 = scmp.lt.s32.totalorder %s172, 15
        %s174 = scalar_select %p173, %s172, 15
        %s175 = smul.addr %s174, 8
        %s176 = scalar_lea.vmem %s0, %s175
        %p177 = pneg %p50
        %p178 = pneg %p47
        %s179 = smul.u32 2, %s22
        %p180 = scmp.lt.s32.totalorder %s179, 1
        %s181 = scalar_select %p180, %s179, 1
        %s182 = smul.addr %s181, 8
        %s183 = scalar_lea.vmem %s1, %s182
        %p184 = pneg %p76
        %p185 = pneg %p73
        %p186 = pneg %p97
        %p187 = pneg %p94
        %p188 = pneg %p125
        %p189 = pneg %p122
        %s190 = sand.u32 %s112, 1
        %s191 = scalar_lea.sflag [#allocation4], %s190
        %s192 = sand.u32 %s112, 1
        %s193 = smul.addr %s192, 128
        %s194 = scalar_lea.vmem [#allocation3], %s193
        %s195 = smul.u32 8, %s21
        %p196 = scmp.lt.s32.totalorder %s195, 15
        %s197 = scalar_select %p196, %s195, 15
        %s198 = smul.addr %s197, 8
        %s199 = scalar_lea.vmem %s0, %s198
        %s200 = smul.u32 8, %s21
        %s201 = smul.u32 2, %s22
        %p202 = scmp.lt.s32.totalorder %s201, 1
        %s203 = scalar_select %p202, %s201, 1
        %s204 = smul.addr %s203, 8
        %s205 = scalar_lea.vmem %s1, %s204
        %s206 = smul.u32 2, %s22
        %s207 = smul.u32 4, %s21
        %v208 = vld [vmem:[%s199] sm:$0xff]
        %v209 = vld [vmem:[%s199 + $0x8] sm:$0xff]
        %v210 = vld [vmem:[%s199 + $0x10] sm:$0xff]
        %v211 = vld [vmem:[%s199 + $0x18] sm:$0xff]
        %v212 = vld [vmem:[%s199 + $0x20] sm:$0xff]
        %v213 = vld [vmem:[%s199 + $0x28] sm:$0xff]
        %v214 = vld [vmem:[%s199 + $0x30] sm:$0xff]
        %v215 = vld [vmem:[%s199 + $0x38] sm:$0xff]
        %v216 = vld [vmem:[%s205] sm:$0xff]
        %v217 = vld [vmem:[%s205 + $0x8] sm:$0xff]
        %v218 = vld [vmem:[%s205 + $0x10] sm:$0xff]
        %v219 = vld [vmem:[%s205 + $0x18] sm:$0xff]
        %vm220 = vcmask 130048
        %v222 = vsel %vm220, %v208, 0
        %v225 = vsel %vm220, %v209, 0
        %v228 = vsel %vm220, %v210, 0
        %v231 = vsel %vm220, %v211, 0
        %v234 = vsel %vm220, %v212, 0
        %v237 = vsel %vm220, %v213, 0
        %v240 = vsel %vm220, %v214, 0
        %v243 = vsel %vm220, %v215, 0
        %245 = vmatpush.msra.mxu0 0.0
        %246 = vmatpush.msra.mxu0 0.0
        %247 = vmatpush.msra.mxu0 0.0
        %248 = vmatpush.msra.mxu0 0.0
        %249 = vmatpush.msra.mxu0 0.0
        %250 = vmatpush.msra.mxu0 0.0
        %251 = vmatpush.msra.mxu0 0.0
        %252 = vmatpush.msra.mxu0 0.0
        %253 = vmatpush.msra.mxu0 0.0
        %254 = vmatpush.msra.mxu0 0.0
        %255 = vmatpush.msra.mxu0 0.0
        %256 = vmatpush.msra.mxu0 0.0
        %257 = vmatpush.msra.mxu0 0.0
        %258 = vmatpush.msra.mxu0 0.0
        %259 = vmatpush.msra.mxu0 %v218
        %260 = vmatpush.msra.mxu0 %v216
        %261 = vmatmul.f32.gmra.mxu0 %v222
        %v262 = vpop.f32.mrf.mxu0
        %v263 = vadd.f32 0.0, %v262
        %264 = vmatmul.f32.gmra.mxu0 %v225
        %v265 = vpop.f32.mrf.mxu0
        %v266 = vadd.f32 0.0, %v265
        %267 = vmatmul.f32.gmra.mxu0 %v228
        %v268 = vpop.f32.mrf.mxu0
        %v269 = vadd.f32 0.0, %v268
        %270 = vmatmul.f32.gmra.mxu0 %v231
        %v271 = vpop.f32.mrf.mxu0
        %v272 = vadd.f32 0.0, %v271
        %273 = vmatmul.f32.gmra.mxu0 %v234
        %v274 = vpop.f32.mrf.mxu0
        %v275 = vadd.f32 0.0, %v274
        %276 = vmatmul.f32.gmra.mxu0 %v237
        %v277 = vpop.f32.mrf.mxu0
        %v278 = vadd.f32 0.0, %v277
        %279 = vmatmul.f32.gmra.mxu0 %v240
        %v280 = vpop.f32.mrf.mxu0
        %v281 = vadd.f32 0.0, %v280
        %282 = vmatmul.f32.gmra.mxu0 %v243
        %v283 = vpop.f32.mrf.mxu0
        %v284 = vadd.f32 0.0, %v283
        %285 = vdwg.mxu0
        %286 = vmatpush.msra.mxu0 0.0
        %287 = vmatpush.msra.mxu0 0.0
        %288 = vmatpush.msra.mxu0 0.0
        %289 = vmatpush.msra.mxu0 0.0
        %290 = vmatpush.msra.mxu0 0.0
        %291 = vmatpush.msra.mxu0 0.0
        %292 = vmatpush.msra.mxu0 0.0
        %293 = vmatpush.msra.mxu0 0.0
        %294 = vmatpush.msra.mxu0 0.0
        %295 = vmatpush.msra.mxu0 0.0
        %296 = vmatpush.msra.mxu0 0.0
        %297 = vmatpush.msra.mxu0 0.0
        %298 = vmatpush.msra.mxu0 0.0
        %299 = vmatpush.msra.mxu0 0.0
        %300 = vmatpush.msra.mxu0 %v219
        %301 = vmatpush.msra.mxu0 %v217
        %302 = vmatmul.f32.gmra.mxu0 %v222
        %v303 = vpop.f32.mrf.mxu0
        %v304 = vadd.f32 0.0, %v303
        %305 = vmatmul.f32.gmra.mxu0 %v225
        %v306 = vpop.f32.mrf.mxu0
        %v307 = vadd.f32 0.0, %v306
        %308 = vmatmul.f32.gmra.mxu0 %v228
        %v309 = vpop.f32.mrf.mxu0
        %v310 = vadd.f32 0.0, %v309
        %311 = vmatmul.f32.gmra.mxu0 %v231
        %v312 = vpop.f32.mrf.mxu0
        %v313 = vadd.f32 0.0, %v312
        %314 = vmatmul.f32.gmra.mxu0 %v234
        %v315 = vpop.f32.mrf.mxu0
        %v316 = vadd.f32 0.0, %v315
        %317 = vmatmul.f32.gmra.mxu0 %v237
        %v318 = vpop.f32.mrf.mxu0
        %v319 = vadd.f32 0.0, %v318
        %320 = vmatmul.f32.gmra.mxu0 %v240
        %v321 = vpop.f32.mrf.mxu0
        %v322 = vadd.f32 0.0, %v321
        %323 = vmatmul.f32.gmra.mxu0 %v243
        %v324 = vpop.f32.mrf.mxu0
        %v325 = vadd.f32 0.0, %v324
        %326 = vdwg.mxu0
        %327 = vst [vmem:[#allocation2] sm:$0xff] %v263
        %328 = vst [vmem:[#allocation2 + $0x8] sm:$0xff] %v304
        %329 = vst [vmem:[#allocation2 + $0x10] sm:$0xff] %v266
        %330 = vst [vmem:[#allocation2 + $0x18] sm:$0xff] %v307
        %331 = vst [vmem:[#allocation2 + $0x20] sm:$0xff] %v269
        %332 = vst [vmem:[#allocation2 + $0x28] sm:$0xff] %v310
        %333 = vst [vmem:[#allocation2 + $0x30] sm:$0xff] %v272
        %334 = vst [vmem:[#allocation2 + $0x38] sm:$0xff] %v313
        %335 = vst [vmem:[#allocation2 + $0x40] sm:$0xff] %v275
        %336 = vst [vmem:[#allocation2 + $0x48] sm:$0xff] %v316
        %337 = vst [vmem:[#allocation2 + $0x50] sm:$0xff] %v278
        %338 = vst [vmem:[#allocation2 + $0x58] sm:$0xff] %v319
        %339 = vst [vmem:[#allocation2 + $0x60] sm:$0xff] %v281
        %340 = vst [vmem:[#allocation2 + $0x68] sm:$0xff] %v322
        %341 = vst [vmem:[#allocation2 + $0x70] sm:$0xff] %v284
        %342 = vst [vmem:[#allocation2 + $0x78] sm:$0xff] %v325
        %v343 = vld [vmem:[%s2] sm:$0xff]
        %v344 = vld [vmem:[%s2 + $0x8] sm:$0xff]
        %v345 = vld [vmem:[%s2 + $0x10] sm:$0xff]
        %v346 = vld [vmem:[%s2 + $0x18] sm:$0xff]
        %s347 = smul.u32 0, 2
        %s348 = smul.addr %s347, 8
        %s349 = scalar_lea.vmem [#allocation2], %s348
        %v350 = vld [vmem:[%s349] sm:$0xff]
        %v351 = vld [vmem:[%s349 + $0x8] sm:$0xff]
        %v352 = vld [vmem:[%s349 + $0x10] sm:$0xff]
        %v353 = vld [vmem:[%s349 + $0x18] sm:$0xff]
        %v355 = vsel %vm220, %v343, 0
        %v358 = vsel %vm220, %v344, 0
        %v361 = vsel %vm220, %v345, 0
        %v364 = vsel %vm220, %v346, 0
        %366 = vmatpush.msra.mxu0 0.0
        %367 = vmatpush.msra.mxu0 0.0
        %368 = vmatpush.msra.mxu0 0.0
        %369 = vmatpush.msra.mxu0 0.0
        %370 = vmatpush.msra.mxu0 0.0
        %371 = vmatpush.msra.mxu0 0.0
        %372 = vmatpush.msra.mxu0 0.0
        %373 = vmatpush.msra.mxu0 0.0
        %374 = vmatpush.msra.mxu0 0.0
        %375 = vmatpush.msra.mxu0 0.0
        %376 = vmatpush.msra.mxu0 0.0
        %377 = vmatpush.msra.mxu0 0.0
        %378 = vmatpush.msra.mxu0 0.0
        %379 = vmatpush.msra.mxu0 0.0
        %380 = vmatpush.msra.mxu0 %v352
        %381 = vmatpush.msra.mxu0 %v350
        %382 = vmatmul.f32.gmra.mxu0 %v355
        %v383 = vpop.f32.mrf.mxu0
        %v384 = vadd.f32 0.0, %v383
        %385 = vmatmul.f32.gmra.mxu0 %v358
        %v386 = vpop.f32.mrf.mxu0
        %v387 = vadd.f32 0.0, %v386
        %388 = vmatmul.f32.gmra.mxu0 %v361
        %v389 = vpop.f32.mrf.mxu0
        %v390 = vadd.f32 0.0, %v389
        %391 = vmatmul.f32.gmra.mxu0 %v364
        %v392 = vpop.f32.mrf.mxu0
        %v393 = vadd.f32 0.0, %v392
        %394 = vdwg.mxu0
        %395 = vmatpush.msra.mxu0 0.0
        %396 = vmatpush.msra.mxu0 0.0
        %397 = vmatpush.msra.mxu0 0.0
        %398 = vmatpush.msra.mxu0 0.0
        %399 = vmatpush.msra.mxu0 0.0
        %400 = vmatpush.msra.mxu0 0.0
        %401 = vmatpush.msra.mxu0 0.0
        %402 = vmatpush.msra.mxu0 0.0
        %403 = vmatpush.msra.mxu0 0.0
        %404 = vmatpush.msra.mxu0 0.0
        %405 = vmatpush.msra.mxu0 0.0
        %406 = vmatpush.msra.mxu0 0.0
        %407 = vmatpush.msra.mxu0 0.0
        %408 = vmatpush.msra.mxu0 0.0
        %409 = vmatpush.msra.mxu0 %v353
        %410 = vmatpush.msra.mxu0 %v351
        %411 = vmatmul.f32.gmra.mxu0 %v355
        %v412 = vpop.f32.mrf.mxu0
        %v413 = vadd.f32 0.0, %v412
        %414 = vmatmul.f32.gmra.mxu0 %v358
        %v415 = vpop.f32.mrf.mxu0
        %v416 = vadd.f32 0.0, %v415
        %417 = vmatmul.f32.gmra.mxu0 %v361
        %v418 = vpop.f32.mrf.mxu0
        %v419 = vadd.f32 0.0, %v418
        %420 = vmatmul.f32.gmra.mxu0 %v364
        %v421 = vpop.f32.mrf.mxu0
        %v422 = vadd.f32 0.0, %v421
        %423 = vdwg.mxu0
        %v424 = vsub.f32 %v384, %v419
        %v425 = vsub.f32 %v387, %v422
        %426 = vst [vmem:[%s194] sm:$0xff] %v424
        %427 = vst [vmem:[%s194 + $0x8] sm:$0xff] %v425
        %v428 = vadd.f32 %v413, %v390
        %v429 = vadd.f32 %v416, %v393
        %s430 = scalar_lea.vmem %s194, 64 [#allocation3]
        %431 = vst [vmem:[%s430] sm:$0xff] %v428
        %432 = vst [vmem:[%s430 + $0x8] sm:$0xff] %v429
        %s433 = smul.u32 2, 2
        %s434 = smul.addr %s433, 8
        %s435 = scalar_lea.vmem [#allocation2], %s434
        %v436 = vld [vmem:[%s435] sm:$0xff]
        %v437 = vld [vmem:[%s435 + $0x8] sm:$0xff]
        %v438 = vld [vmem:[%s435 + $0x10] sm:$0xff]
        %v439 = vld [vmem:[%s435 + $0x18] sm:$0xff]
        %440 = vmatpush.msra.mxu0 0.0
        %441 = vmatpush.msra.mxu0 0.0
        %442 = vmatpush.msra.mxu0 0.0
        %443 = vmatpush.msra.mxu0 0.0
        %444 = vmatpush.msra.mxu0 0.0
        %445 = vmatpush.msra.mxu0 0.0
        %446 = vmatpush.msra.mxu0 0.0
        %447 = vmatpush.msra.mxu0 0.0
        %448 = vmatpush.msra.mxu0 0.0
        %449 = vmatpush.msra.mxu0 0.0
        %450 = vmatpush.msra.mxu0 0.0
        %451 = vmatpush.msra.mxu0 0.0
        %452 = vmatpush.msra.mxu0 0.0
        %453 = vmatpush.msra.mxu0 0.0
        %454 = vmatpush.msra.mxu0 %v438
        %455 = vmatpush.msra.mxu0 %v436
        %456 = vmatmul.f32.gmra.mxu0 %v355
        %v457 = vpop.f32.mrf.mxu0
        %v458 = vadd.f32 0.0, %v457
        %459 = vmatmul.f32.gmra.mxu0 %v358
        %v460 = vpop.f32.mrf.mxu0
        %v461 = vadd.f32 0.0, %v460
        %462 = vmatmul.f32.gmra.mxu0 %v361
        %v463 = vpop.f32.mrf.mxu0
        %v464 = vadd.f32 0.0, %v463
        %465 = vmatmul.f32.gmra.mxu0 %v364
        %v466 = vpop.f32.mrf.mxu0
        %v467 = vadd.f32 0.0, %v466
        %468 = vdwg.mxu0
        %469 = vmatpush.msra.mxu0 0.0
        %470 = vmatpush.msra.mxu0 0.0
        %471 = vmatpush.msra.mxu0 0.0
        %472 = vmatpush.msra.mxu0 0.0
        %473 = vmatpush.msra.mxu0 0.0
        %474 = vmatpush.msra.mxu0 0.0
        %475 = vmatpush.msra.mxu0 0.0
        %476 = vmatpush.msra.mxu0 0.0
        %477 = vmatpush.msra.mxu0 0.0
        %478 = vmatpush.msra.mxu0 0.0
        %479 = vmatpush.msra.mxu0 0.0
        %480 = vmatpush.msra.mxu0 0.0
        %481 = vmatpush.msra.mxu0 0.0
        %482 = vmatpush.msra.mxu0 0.0
        %483 = vmatpush.msra.mxu0 %v439
        %484 = vmatpush.msra.mxu0 %v437
        %485 = vmatmul.f32.gmra.mxu0 %v355
        %v486 = vpop.f32.mrf.mxu0
        %v487 = vadd.f32 0.0, %v486
        %488 = vmatmul.f32.gmra.mxu0 %v358
        %v489 = vpop.f32.mrf.mxu0
        %v490 = vadd.f32 0.0, %v489
        %491 = vmatmul.f32.gmra.mxu0 %v361
        %v492 = vpop.f32.mrf.mxu0
        %v493 = vadd.f32 0.0, %v492
        %494 = vmatmul.f32.gmra.mxu0 %v364
        %v495 = vpop.f32.mrf.mxu0
        %v496 = vadd.f32 0.0, %v495
        %497 = vdwg.mxu0
        %v498 = vsub.f32 %v458, %v493
        %v499 = vsub.f32 %v461, %v496
        %s500 = scalar_lea.vmem %s194, 16 [#allocation3]
        %501 = vst [vmem:[%s500] sm:$0xff] %v498
        %502 = vst [vmem:[%s500 + $0x8] sm:$0xff] %v499
        %v503 = vadd.f32 %v487, %v464
        %v504 = vadd.f32 %v490, %v467
        %s505 = scalar_lea.vmem %s194, 80 [#allocation3]
        %506 = vst [vmem:[%s505] sm:$0xff] %v503
        %507 = vst [vmem:[%s505 + $0x8] sm:$0xff] %v504
        %s508 = smul.u32 4, 2
        %s509 = smul.addr %s508, 8
        %s510 = scalar_lea.vmem [#allocation2], %s509
        %v511 = vld [vmem:[%s510] sm:$0xff]
        %v512 = vld [vmem:[%s510 + $0x8] sm:$0xff]
        %v513 = vld [vmem:[%s510 + $0x10] sm:$0xff]
        %v514 = vld [vmem:[%s510 + $0x18] sm:$0xff]
        %515 = vmatpush.msra.mxu0 0.0
        %516 = vmatpush.msra.mxu0 0.0
        %517 = vmatpush.msra.mxu0 0.0
        %518 = vmatpush.msra.mxu0 0.0
        %519 = vmatpush.msra.mxu0 0.0
        %520 = vmatpush.msra.mxu0 0.0
        %521 = vmatpush.msra.mxu0 0.0
        %522 = vmatpush.msra.mxu0 0.0
        %523 = vmatpush.msra.mxu0 0.0
        %524 = vmatpush.msra.mxu0 0.0
        %525 = vmatpush.msra.mxu0 0.0
        %526 = vmatpush.msra.mxu0 0.0
        %527 = vmatpush.msra.mxu0 0.0
        %528 = vmatpush.msra.mxu0 0.0
        %529 = vmatpush.msra.mxu0 %v513
        %530 = vmatpush.msra.mxu0 %v511
        %531 = vmatmul.f32.gmra.mxu0 %v355
        %v532 = vpop.f32.mrf.mxu0
        %v533 = vadd.f32 0.0, %v532
        %534 = vmatmul.f32.gmra.mxu0 %v358
        %v535 = vpop.f32.mrf.mxu0
        %v536 = vadd.f32 0.0, %v535
        %537 = vmatmul.f32.gmra.mxu0 %v361
        %v538 = vpop.f32.mrf.mxu0
        %v539 = vadd.f32 0.0, %v538
        %540 = vmatmul.f32.gmra.mxu0 %v364
        %v541 = vpop.f32.mrf.mxu0
        %v542 = vadd.f32 0.0, %v541
        %543 = vdwg.mxu0
        %544 = vmatpush.msra.mxu0 0.0
        %545 = vmatpush.msra.mxu0 0.0
        %546 = vmatpush.msra.mxu0 0.0
        %547 = vmatpush.msra.mxu0 0.0
        %548 = vmatpush.msra.mxu0 0.0
        %549 = vmatpush.msra.mxu0 0.0
        %550 = vmatpush.msra.mxu0 0.0
        %551 = vmatpush.msra.mxu0 0.0
        %552 = vmatpush.msra.mxu0 0.0
        %553 = vmatpush.msra.mxu0 0.0
        %554 = vmatpush.msra.mxu0 0.0
        %555 = vmatpush.msra.mxu0 0.0
        %556 = vmatpush.msra.mxu0 0.0
        %557 = vmatpush.msra.mxu0 0.0
        %558 = vmatpush.msra.mxu0 %v514
        %559 = vmatpush.msra.mxu0 %v512
        %560 = vmatmul.f32.gmra.mxu0 %v355
        %v561 = vpop.f32.mrf.mxu0
        %v562 = vadd.f32 0.0, %v561
        %563 = vmatmul.f32.gmra.mxu0 %v358
        %v564 = vpop.f32.mrf.mxu0
        %v565 = vadd.f32 0.0, %v564
        %566 = vmatmul.f32.gmra.mxu0 %v361
        %v567 = vpop.f32.mrf.mxu0
        %v568 = vadd.f32 0.0, %v567
        %569 = vmatmul.f32.gmra.mxu0 %v364
        %v570 = vpop.f32.mrf.mxu0
        %v571 = vadd.f32 0.0, %v570
        %572 = vdwg.mxu0
        %v573 = vsub.f32 %v533, %v568
        %v574 = vsub.f32 %v536, %v571
        %s575 = scalar_lea.vmem %s194, 32 [#allocation3]
        %576 = vst [vmem:[%s575] sm:$0xff] %v573
        %577 = vst [vmem:[%s575 + $0x8] sm:$0xff] %v574
        %v578 = vadd.f32 %v562, %v539
        %v579 = vadd.f32 %v565, %v542
        %s580 = scalar_lea.vmem %s194, 96 [#allocation3]
        %581 = vst [vmem:[%s580] sm:$0xff] %v578
        %582 = vst [vmem:[%s580 + $0x8] sm:$0xff] %v579
        %s583 = smul.u32 6, 2
        %s584 = smul.addr %s583, 8
        %s585 = scalar_lea.vmem [#allocation2], %s584
        %v586 = vld [vmem:[%s585] sm:$0xff]
        %v587 = vld [vmem:[%s585 + $0x8] sm:$0xff]
        %v588 = vld [vmem:[%s585 + $0x10] sm:$0xff]
        %v589 = vld [vmem:[%s585 + $0x18] sm:$0xff]
        %590 = vmatpush.msra.mxu0 0.0
        %591 = vmatpush.msra.mxu0 0.0
        %592 = vmatpush.msra.mxu0 0.0
        %593 = vmatpush.msra.mxu0 0.0
        %594 = vmatpush.msra.mxu0 0.0
        %595 = vmatpush.msra.mxu0 0.0
        %596 = vmatpush.msra.mxu0 0.0
        %597 = vmatpush.msra.mxu0 0.0
        %598 = vmatpush.msra.mxu0 0.0
        %599 = vmatpush.msra.mxu0 0.0
        %600 = vmatpush.msra.mxu0 0.0
        %601 = vmatpush.msra.mxu0 0.0
        %602 = vmatpush.msra.mxu0 0.0
        %603 = vmatpush.msra.mxu0 0.0
        %604 = vmatpush.msra.mxu0 %v588
        %605 = vmatpush.msra.mxu0 %v586
        %606 = vmatmul.f32.gmra.mxu0 %v355
        %v607 = vpop.f32.mrf.mxu0
        %v608 = vadd.f32 0.0, %v607
        %609 = vmatmul.f32.gmra.mxu0 %v358
        %v610 = vpop.f32.mrf.mxu0
        %v611 = vadd.f32 0.0, %v610
        %612 = vmatmul.f32.gmra.mxu0 %v361
        %v613 = vpop.f32.mrf.mxu0
        %v614 = vadd.f32 0.0, %v613
        %615 = vmatmul.f32.gmra.mxu0 %v364
        %v616 = vpop.f32.mrf.mxu0
        %v617 = vadd.f32 0.0, %v616
        %618 = vdwg.mxu0
        %619 = vmatpush.msra.mxu0 0.0
        %620 = vmatpush.msra.mxu0 0.0
        %621 = vmatpush.msra.mxu0 0.0
        %622 = vmatpush.msra.mxu0 0.0
        %623 = vmatpush.msra.mxu0 0.0
        %624 = vmatpush.msra.mxu0 0.0
        %625 = vmatpush.msra.mxu0 0.0
        %626 = vmatpush.msra.mxu0 0.0
        %627 = vmatpush.msra.mxu0 0.0
        %628 = vmatpush.msra.mxu0 0.0
        %629 = vmatpush.msra.mxu0 0.0
        %630 = vmatpush.msra.mxu0 0.0
        %631 = vmatpush.msra.mxu0 0.0
        %632 = vmatpush.msra.mxu0 0.0
        %633 = vmatpush.msra.mxu0 %v589
        %634 = vmatpush.msra.mxu0 %v587
        %635 = vmatmul.f32.gmra.mxu0 %v355
        %v636 = vpop.f32.mrf.mxu0
        %v637 = vadd.f32 0.0, %v636
        %638 = vmatmul.f32.gmra.mxu0 %v358
        %v639 = vpop.f32.mrf.mxu0
        %v640 = vadd.f32 0.0, %v639
        %641 = vmatmul.f32.gmra.mxu0 %v361
        %v642 = vpop.f32.mrf.mxu0
        %v643 = vadd.f32 0.0, %v642
        %644 = vmatmul.f32.gmra.mxu0 %v364
        %v645 = vpop.f32.mrf.mxu0
        %v646 = vadd.f32 0.0, %v645
        %647 = vdwg.mxu0
        %v648 = vsub.f32 %v608, %v643
        %v649 = vsub.f32 %v611, %v646
        %s650 = scalar_lea.vmem %s194, 48 [#allocation3]
        %651 = vst [vmem:[%s650] sm:$0xff] %v648
        %652 = vst [vmem:[%s650 + $0x8] sm:$0xff] %v649
        %v653 = vadd.f32 %v637, %v614
        %v654 = vadd.f32 %v640, %v617
        %s655 = scalar_lea.vmem %s194, 112 [#allocation3]
        %656 = vst [vmem:[%s655] sm:$0xff] %v653
        %657 = vst [vmem:[%s655 + $0x8] sm:$0xff] %v654
        %s658 = sand.u32 %s112, 1
        %s659 = scalar_lea.sflag [#allocation4], %s658
        %s660 = sand.u32 %s112, 1
        %s661 = smul.addr %s660, 128
        %s662 = scalar_lea.vmem [#allocation3], %s661
        // Predicated region
        $region33: #{tpu_custom_call.1} parent=31 // pred_check
          %p663 = pneg %p122
        $region34: #{tpu_custom_call.1} parent=31 // pred_check_branch
          %665 = sbr.rel (%p663) target = $region36
        $region35: #{tpu_custom_call.1} parent=31 // pred_region
          #allocation6 [shape = 'u32[6]{0}', space=smem, size = 0x18, scoped, tag = 'DMA stride descriptor']
          %s666 = smul.u32 4, %s21
          %668 = vsyncadd %s659, 0
          %s669 = smul.addr %s666, 2
          %s670 = sadd.s32 %s22, %s669
          %s671 = smul.addr %s670, 8
          %s672 = scalar_lea.hbm %s3, %s671
          %s674 = sshll.u32 1, 14
          %s675 = sxor.u32 4294967295, %s674
          %s678 = sshll.u32 7, 18
          %s679 = sxor.u32 4294967295, %s678
          %s680 = sand.u32 0, %s679
          %s682 = sor.u32 %s680, 0
          %s683 = sshll.u32 %s662, 4
          %s684 = int_to_ptr.vmem [resolvable:$true] %s683
          %s685 = sshll.u32 %s672, 4
          %s686 = int_to_ptr.hbm [resolvable:$true] %s685
          %692 = sst [smem:[#allocation6]] 1024
          %s693 = scalar_lea.smem [#allocation6], 1
          %694 = sst [smem:[%s693]] 2048
          %s695 = scalar_lea.smem [#allocation6], 2
          %696 = sst [smem:[%s695]] 8
          %s697 = scalar_lea.smem [#allocation6], 3
          %698 = sst [smem:[%s697]] 128
          %s699 = scalar_lea.smem [#allocation6], 4
          %700 = sst [smem:[%s699]] 128
          %s701 = scalar_lea.smem [#allocation6], 5
          %702 = sst [smem:[%s701]] 8
          %704 = dma.general %s684, 2048, %s686, %s659, [#allocation5], [#allocation6], %s682, 0
        $region36: #{tpu_custom_call.1} parent=31 // pred_fallthru
          _
      $region32: #{tpu_custom_call.1} parent=5 // pred_fallthru
        _
      %p705 = scmp.le.s32.totalorder 2, %s12
      // Predicated region
      $region37: #{tpu_custom_call.1} parent=5 // pred_check
        %p706 = pneg %p705
      $region38: #{tpu_custom_call.1} parent=5 // pred_check_branch
        %708 = sbr.rel (%p706) target = $region40
      $region39: #{tpu_custom_call.1} parent=5 // pred_region
        %s709 = ssub.s32 %s12, 2
        // Predicated region
        $region41: #{tpu_custom_call.1} parent=39 // pred_check
          %p710 = pneg %p128
        $region42: #{tpu_custom_call.1} parent=39 // pred_check_branch
          %712 = sbr.rel (%p710) target = $region44
        $region43: #{tpu_custom_call.1} parent=39 // pred_region
          %s713 = sand.u32 %s113, 1
          %s714 = scalar_lea.sflag [#allocation4], %s713
          %s715 = sand.u32 %s113, 1
          %s716 = smul.addr %s715, 128
          %s717 = scalar_lea.vmem [#allocation3], %s716
          %719 = dma.done %s714, 2048
        $region44: #{tpu_custom_call.1} parent=39 // pred_fallthru
          _
      $region40: #{tpu_custom_call.1} parent=5 // pred_fallthru
        _
    $region6: #{tpu_custom_call.1} parent=1 // loop_footer
      %s16 = sadd.s32 1, %s12
    $region7: #{tpu_custom_call.1} parent=1 // loop_footer_branch
      %11 = sbr.rel target = $region3
    $region8: #{tpu_custom_call.1} parent=1 // loop_exit
      _
    %720 = vsyncpa [#allocation4], 1
    %s721 = scalar_lea.sflag [#allocation4], 1
    %722 = vsyncpa %s721, 1

</llo_original>
